<compile_context>
chip_gen: v7x
topology: tpu7x:2x2x1
jax: 0.10.0
libtpu: 0.0.40
codegen_flags: <defaults>
</compile_context>

<pallas_src>
import functools

import jax
import jax.numpy as jnp
from jax.experimental import pallas as pl
from jax.experimental.pallas import tpu as pltpu


def _clf_kernel(x_ref, wt_ref, b_ref, o_ref):
    """One batch tile: logits = x @ W^T + b ; softmax over the last dim.

    x_ref : (TB, 256)     streamed per grid step
    wt_ref: (256, N_pad)  grid-resident, pre-transposed + lane-padded weight
    b_ref : (1, N_pad)    grid-resident bias (padded lanes hold -1e30)
    o_ref : (TB, N_pad)   lane-dense output tile
    """
    x = x_ref[...]
    # Canonical (M,K)x(K,N) matmul on the MXU with f32 accumulate; the weight
    # is already in (K, N) layout so no in-kernel transpose is emitted.
    logits = jnp.dot(x, wt_ref[...], preferred_element_type=jnp.float32) + b_ref[...]

    # Numerically stable softmax over the last (lane) dim. Padded lanes carry
    # logits of -1e30, so exp underflows to exactly 0 and they take no mass.
    m = jnp.max(logits, axis=-1, keepdims=True)
    e = jnp.exp(logits - m)
    denom = jnp.sum(e, axis=-1, keepdims=True)
    # EUP approx reciprocal (separate VLIW slot) + one Newton-Raphson step so
    # each row sums to 1 at ~f32 accuracy (cheap: kernel is HBM-bound anyway).
    r = pl.reciprocal(denom, approx=True)
    r = r * (2.0 - denom * r)
    o_ref[...] = (e * r).astype(o_ref.dtype)


def _round_up(n, m):
    return ((n + m - 1) // m) * m


def clf_forward(x, weight, bias, *, block_b=2048):
    """softmax(x @ weight.T + bias, axis=-1).

    x: (B, 256) f32, weight: (out_dim, 256) f32, bias: (out_dim,) f32.
    Returns (B, out_dim) f32.
    """
    B, in_dim = x.shape
    out_dim = weight.shape[0]

    # ---- lane-dense output: pad N up to a multiple of 128 -------------------
    n_pad = _round_up(out_dim, 128)
    # One-time wrapper-side transpose + pad of the small, grid-resident weight:
    # (out_dim, 256) -> (256, n_pad). Padded output columns get weight 0 and
    # bias -1e30 -> softmax assigns them exactly zero probability.
    wt = jnp.pad(weight.T.astype(jnp.float32), ((0, 0), (0, n_pad - out_dim)))
    b2 = jnp.pad(bias.astype(jnp.float32).reshape(1, out_dim),
                 ((0, 0), (0, n_pad - out_dim)), constant_values=-1e30)

    # ---- batch tiling: no jnp.pad of x; ragged last block handled by Pallas -
    tb = min(block_b, _round_up(B, 8))
    # v7x megacore: large batches that would otherwise be a single grid step
    # are split into 2 so both TensorCores get work (moot on v5e/v6e: 1 TC).
    if B <= tb and B >= 1024:
        tb = _round_up(pl.cdiv(B, 2), 8)
    grid = (pl.cdiv(B, tb),)

    # ---- VMEM budget: resident W^T/bias + double-buffered x / out tiles -----
    vmem_bytes = 4 * (in_dim * n_pad + n_pad + 2 * tb * in_dim + 2 * tb * n_pad)
    compiler_kwargs = dict(dimension_semantics=("parallel",))
    if vmem_bytes > (12 << 20):
        # Override the smaller scoped defaults (v5e 16 MiB) while staying well
        # under v7x's 64 MiB physical VMEM.
        compiler_kwargs["vmem_limit_bytes"] = min(2 * vmem_bytes, 48 << 20)
    # TODO(synk): for very large out_dim (big classifier vocabularies) the
    # resident (256, n_pad) weight no longer fits VMEM — add an inner
    # "arbitrary" grid axis over N-tiles with an online (flash-style) softmax.
    # TODO(synk): if the upstream producer can hand x over in bf16 (or via
    # allow_input_fusion), halve the dominant x HBM stream; kept f32 here.

    out = pl.pallas_call(
        _clf_kernel,
        out_shape=jax.ShapeDtypeStruct((B, n_pad), jnp.float32),
        grid_spec=pl.GridSpec(
            grid=grid,
            in_specs=[
                pl.BlockSpec((tb, in_dim), lambda i: (i, 0)),       # streamed x
                pl.BlockSpec((in_dim, n_pad), lambda i: (0, 0)),    # resident W^T
                pl.BlockSpec((1, n_pad), lambda i: (0, 0)),         # resident bias
            ],
            out_specs=pl.BlockSpec((tb, n_pad), lambda i: (i, 0)),
        ),
        compiler_params=pltpu.CompilerParams(**compiler_kwargs),
        cost_estimate=pl.CostEstimate(
            flops=2 * B * in_dim * n_pad,
            transcendentals=B * n_pad,
            bytes_accessed=4 * (B * in_dim + in_dim * n_pad + B * n_pad),
        ),
    )(x, wt, b2)

    # Drop padded classes (tiny (B, out_dim) copy; x is never re-streamed).
    return out[:, :out_dim] if n_pad != out_dim else out


clf_forward_jit = jax.jit(functools.partial(clf_forward, block_b=2048))


if __name__ == "__main__":
    key = jax.random.PRNGKey(0)
    k_x, k_w, k_b = jax.random.split(key, 3)

    batch = 8
    in_dim = 256        # fixed by the module: Linear(256, output_dim)
    output_dim = 10     # small output dim for the synthetic test

    x = jax.random.normal(k_x, (batch, in_dim), dtype=jnp.float32)
    # Deterministic params (mimic torch.nn.Linear uniform(-1/sqrt(fan_in), +)).
    bound = 1.0 / jnp.sqrt(jnp.float32(in_dim))
    weight = jax.random.uniform(k_w, (output_dim, in_dim), dtype=jnp.float32,
                                minval=-bound, maxval=bound)
    bias = jax.random.uniform(k_b, (output_dim,), dtype=jnp.float32,
                              minval=-bound, maxval=bound)

    out = jax.block_until_ready(clf_forward_jit(x, weight, bias))

    ref = jax.nn.softmax(x @ weight.T + bias, axis=-1)
    assert out.shape == (batch, output_dim)
    assert jnp.allclose(out, ref, atol=1e-3, rtol=1e-3)
    assert jnp.allclose(jnp.sum(out, axis=-1), 1.0, atol=1e-3)

    # Ragged / multi-step path: 1030 rows is not a tile multiple and is large
    # enough to trigger the 2-step grid split (v7x megacore coverage), with a
    # partial last block and no wrapper-side padding pass over x.
    x_big = jax.random.normal(k_x, (1030, in_dim), dtype=jnp.float32)
    out_big = jax.block_until_ready(clf_forward_jit(x_big, weight, bias))
    ref_big = jax.nn.softmax(x_big @ weight.T + bias, axis=-1)
    assert out_big.shape == (1030, output_dim)
    assert jnp.allclose(out_big, ref_big, atol=1e-3, rtol=1e-3)
    assert jnp.allclose(jnp.sum(out_big, axis=-1), 1.0, atol=1e-3)

    print("KERNEL_OK")
</pallas_src>

<mosaic_0001>
module attributes {stable_mosaic.version = 11 : i64} {
  func.func @_clf_kernel(%arg0: i32, %arg1: memref<8x256xf32, #tpu.memory_space<vmem>>, %arg2: memref<256x128xf32, #tpu.memory_space<vmem>>, %arg3: memref<1x128xf32, #tpu.memory_space<vmem>>, %arg4: memref<8x128xf32, #tpu.memory_space<vmem>>) attributes {dimension_semantics = [#tpu.dimension_semantics<parallel>], iteration_bounds = array<i64: 1>, scalar_prefetch = 0 : i64, scratch_operands = 0 : i64, tpu.core_type = #tpu.core_type<tc>, window_params = [{transform_indices = @transform_0, window_bounds = array<i64: 8, 256>}, {pipeline_mode = #tpu.pipeline_mode<synchronous>, transform_indices = @transform_1, window_bounds = array<i64: 256, 128>}, {pipeline_mode = #tpu.pipeline_mode<synchronous>, transform_indices = @transform_2, window_bounds = array<i64: 1, 128>}, {transform_indices = @transform_3, window_bounds = array<i64: 8, 128>}]} {
    %c0 = arith.constant 0 : index
    %c0_0 = arith.constant 0 : index
    %0 = vector.load %arg1[%c0, %c0_0] : memref<8x256xf32, #tpu.memory_space<vmem>>, vector<8x256xf32>
    %c0_1 = arith.constant 0 : index
    %c0_2 = arith.constant 0 : index
    %1 = vector.load %arg2[%c0_1, %c0_2] : memref<256x128xf32, #tpu.memory_space<vmem>>, vector<256x128xf32>
    %cst = arith.constant dense<0.000000e+00> : vector<8x128xf32>
    %2 = tpu.matmul %0, %1, %cst {dimension_numbers = #tpu.dot_dimension_numbers<[1], [0], [0], [1], [0, 0, 1, 1], [], []>} : vector<8x256xf32>, vector<256x128xf32>, vector<8x128xf32> -> vector<8x128xf32>
    %c0_3 = arith.constant 0 : index
    %c0_4 = arith.constant 0 : index
    %3 = vector.load %arg3[%c0_3, %c0_4] : memref<1x128xf32, #tpu.memory_space<vmem>>, vector<1x128xf32>
    %4 = vector.broadcast %3 : vector<1x128xf32> to vector<8x128xf32>
    %5 = arith.addf %2, %4 : vector<8x128xf32>
    %cst_5 = arith.constant dense<0xFF800000> : vector<8xf32>
    %6 = vector.multi_reduction <maximumf>, %5, %cst_5 [1] : vector<8x128xf32> to vector<8xf32>
    %7 = vector.shape_cast %6 : vector<8xf32> to vector<8x1xf32>
    %8 = vector.broadcast %7 : vector<8x1xf32> to vector<8x128xf32>
    %9 = arith.subf %5, %8 : vector<8x128xf32>
    %10 = math.exp %9 : vector<8x128xf32>
    %cst_6 = arith.constant dense<0.000000e+00> : vector<8xf32>
    %11 = vector.multi_reduction <add>, %10, %cst_6 [1] : vector<8x128xf32> to vector<8xf32>
    %12 = vector.shape_cast %11 : vector<8xf32> to vector<8x1xf32>
    %13 = tpu.reciprocal %12 {approx = true} : vector<8x1xf32> -> vector<8x1xf32>
    %14 = arith.mulf %12, %13 : vector<8x1xf32>
    %cst_7 = arith.constant 2.000000e+00 : f32
    %15 = vector.broadcast %cst_7 : f32 to vector<8x1xf32>
    %16 = arith.subf %15, %14 : vector<8x1xf32>
    %17 = arith.mulf %13, %16 : vector<8x1xf32>
    %18 = vector.broadcast %17 : vector<8x1xf32> to vector<8x128xf32>
    %19 = arith.mulf %10, %18 : vector<8x128xf32>
    %c0_8 = arith.constant 0 : index
    %c0_9 = arith.constant 0 : index
    %20 = vector.load %arg4[%c0_8, %c0_9] : memref<8x128xf32, #tpu.memory_space<vmem>>, vector<8x128xf32>
    tpu.vector_store %arg4[%c0_8, %c0_9], %19 {strides = array<i32>} : memref<8x128xf32, #tpu.memory_space<vmem>>, vector<8x128xf32>,
    return
  }
  func.func @transform_0(%arg0: i32) -> (i32, i32) {
    %c0_i32 = arith.constant 0 : i32
    %c0_i32_0 = arith.constant 0 : i32
    return %arg0, %c0_i32 : i32, i32
  }
  func.func @transform_1(%arg0: i32) -> (i32, i32) {
    %c0_i32 = arith.constant 0 : i32
    %c0_i32_0 = arith.constant 0 : i32
    %c0_i32_1 = arith.constant 0 : i32
    return %c0_i32, %c0_i32_0 : i32, i32
  }
  func.func @transform_2(%arg0: i32) -> (i32, i32) {
    %c0_i32 = arith.constant 0 : i32
    %c0_i32_0 = arith.constant 0 : i32
    %c0_i32_1 = arith.constant 0 : i32
    return %c0_i32, %c0_i32_0 : i32, i32
  }
  func.func @transform_3(%arg0: i32) -> (i32, i32) {
    %c0_i32 = arith.constant 0 : i32
    %c0_i32_0 = arith.constant 0 : i32
    return %arg0, %c0_i32 : i32, i32
  }
}

</mosaic_0001>

<llo_original>
// kernel: clf_forward.1
$region0: #{clf_forward.1}
  #allocation0 [shape = 'u32[]', space=smem, size = 0x4, offset = 0x4, fixed_abs, tag = 'smem constant byte address 0x4 - core index']
  #allocation1 [shape = 'u32[144,128]{1,0:T(1,128)}', space=vmem, size = 0x12000, scoped, tag = 'internal scratch']
  %s0 = inlined_call_operand.vmem [shape: f32[8,256], index: 0, kind: input, shape index: {}]
  %s1 = inlined_call_operand.vmem [shape: f32[256,128], index: 1, kind: input, shape index: {}]
  %s2 = inlined_call_operand.vmem [shape: f32[1,128], index: 2, kind: input, shape index: {}]
  %s3 = inlined_call_operand.hbm [shape: f32[8,128], index: 3, kind: output, shape index: {}]
  %s4 = sld [smem:[#allocation0]]
  $region22: #{clf_forward.1} parent=0
    _
  %s6 = ssub.s32 1, %s4
  %s7 = scalar_select 0, %s6, %s4
  $region1: #{clf_forward.1} parent=0
    #allocation2 [shape = 'u8[4096]{0}', space=vmem, size = 0x1000, scoped, tag = 'output window, operand 0, single buffered']
    #allocation3 [shape = 's32[1]{0}', space=sflag, size = 0x4, scoped, tag = 'scoped memory for clf_forward.1']
    %8 = vsyncpa [#allocation3], 0
    // Predicated region
    $region2: #{clf_forward.1} parent=1 // pred_check
      _
    $region3: #{clf_forward.1} parent=1 // pred_check_branch
      %10 = sbr.rel (0) target = $region5
    $region4: #{clf_forward.1} parent=1 // pred_region
      _
    $region5: #{clf_forward.1} parent=1 // pred_fallthru
      _
    // Predicated region
    $region6: #{clf_forward.1} parent=1 // pred_check
      _
    $region7: #{clf_forward.1} parent=1 // pred_check_branch
      %12 = sbr.rel (0) target = $region9
    $region8: #{clf_forward.1} parent=1 // pred_region
      _
    $region9: #{clf_forward.1} parent=1 // pred_fallthru
      _
    // Predicated region
    $region10: #{clf_forward.1} parent=1 // pred_check
      _
    $region11: #{clf_forward.1} parent=1 // pred_check_branch
      %14 = sbr.rel (0) target = $region13
    $region12: #{clf_forward.1} parent=1 // pred_region
      _
    $region13: #{clf_forward.1} parent=1 // pred_fallthru
      _
    %v15 = vld [vmem:[%s0] sm:$0xff]
    %v16 = vld [vmem:[%s0 + $0x8] sm:$0xff]
    %v17 = vld [vmem:[%s1] sm:$0xff]
    %v18 = vld [vmem:[%s1 + $0x8] sm:$0xff]
    %v19 = vld [vmem:[%s1 + $0x10] sm:$0xff]
    %v20 = vld [vmem:[%s1 + $0x18] sm:$0xff]
    %v21 = vld [vmem:[%s1 + $0x20] sm:$0xff]
    %v22 = vld [vmem:[%s1 + $0x28] sm:$0xff]
    %v23 = vld [vmem:[%s1 + $0x30] sm:$0xff]
    %v24 = vld [vmem:[%s1 + $0x38] sm:$0xff]
    %v25 = vld [vmem:[%s1 + $0x40] sm:$0xff]
    %v26 = vld [vmem:[%s1 + $0x48] sm:$0xff]
    %v27 = vld [vmem:[%s1 + $0x50] sm:$0xff]
    %v28 = vld [vmem:[%s1 + $0x58] sm:$0xff]
    %v29 = vld [vmem:[%s1 + $0x60] sm:$0xff]
    %v30 = vld [vmem:[%s1 + $0x68] sm:$0xff]
    %v31 = vld [vmem:[%s1 + $0x70] sm:$0xff]
    %v32 = vld [vmem:[%s1 + $0x78] sm:$0xff]
    %v33 = vld [vmem:[%s1 + $0x80] sm:$0xff]
    %v34 = vld [vmem:[%s1 + $0x88] sm:$0xff]
    %v35 = vld [vmem:[%s1 + $0x90] sm:$0xff]
    %v36 = vld [vmem:[%s1 + $0x98] sm:$0xff]
    %v37 = vld [vmem:[%s1 + $0xa0] sm:$0xff]
    %v38 = vld [vmem:[%s1 + $0xa8] sm:$0xff]
    %v39 = vld [vmem:[%s1 + $0xb0] sm:$0xff]
    %v40 = vld [vmem:[%s1 + $0xb8] sm:$0xff]
    %v41 = vld [vmem:[%s1 + $0xc0] sm:$0xff]
    %v42 = vld [vmem:[%s1 + $0xc8] sm:$0xff]
    %v43 = vld [vmem:[%s1 + $0xd0] sm:$0xff]
    %v44 = vld [vmem:[%s1 + $0xd8] sm:$0xff]
    %v45 = vld [vmem:[%s1 + $0xe0] sm:$0xff]
    %v46 = vld [vmem:[%s1 + $0xe8] sm:$0xff]
    %v47 = vld [vmem:[%s1 + $0xf0] sm:$0xff]
    %v48 = vld [vmem:[%s1 + $0xf8] sm:$0xff]
    %v49 = vld [vmem:[%s2] sm:$0x1]
    %v51 = vlaneseq
    %v52 = vshrl.u32 %v51, 7
    %v53 = vsub.s32 0, %v52
    %v54 = vrot.slane %v49, %v53
    %56 = vmatprep.subr.mxu0 0.0
    %57 = vmatpush1.msra.mxu0 %v17
    %58 = vmatprep.subr.mxu0 0.0
    %59 = vmatpush1.msra.mxu0 %v18
    %60 = vmatprep.subr.mxu0 0.0
    %61 = vmatpush1.msra.mxu0 %v19
    %62 = vmatprep.subr.mxu0 0.0
    %63 = vmatpush1.msra.mxu0 %v20
    %64 = vmatprep.subr.mxu0 0.0
    %65 = vmatpush1.msra.mxu0 %v21
    %66 = vmatprep.subr.mxu0 0.0
    %67 = vmatpush1.msra.mxu0 %v22
    %68 = vmatprep.subr.mxu0 0.0
    %69 = vmatpush1.msra.mxu0 %v23
    %70 = vmatprep.subr.mxu0 0.0
    %71 = vmatpush1.msra.mxu0 %v24
    %72 = vmatprep.subr.mxu0 0.0
    %73 = vmatpush1.msra.mxu0 %v25
    %74 = vmatprep.subr.mxu0 0.0
    %75 = vmatpush1.msra.mxu0 %v26
    %76 = vmatprep.subr.mxu0 0.0
    %77 = vmatpush1.msra.mxu0 %v27
    %78 = vmatprep.subr.mxu0 0.0
    %79 = vmatpush1.msra.mxu0 %v28
    %80 = vmatprep.subr.mxu0 0.0
    %81 = vmatpush1.msra.mxu0 %v29
    %82 = vmatprep.subr.mxu0 0.0
    %83 = vmatpush1.msra.mxu0 %v30
    %84 = vmatprep.subr.mxu0 0.0
    %85 = vmatpush1.msra.mxu0 %v31
    %86 = vmatprep.subr.mxu0 0.0
    %87 = vmatpush1.msra.mxu0 %v32
    %88 = vmatprep.subr.mxu0 0.0
    %89 = vmatpush1.msra.mxu0 %v33
    %90 = vmatprep.subr.mxu0 0.0
    %91 = vmatpush1.msra.mxu0 %v34
    %92 = vmatprep.subr.mxu0 0.0
    %93 = vmatpush1.msra.mxu0 %v35
    %94 = vmatprep.subr.mxu0 0.0
    %95 = vmatpush1.msra.mxu0 %v36
    %96 = vmatprep.subr.mxu0 0.0
    %97 = vmatpush1.msra.mxu0 %v37
    %98 = vmatprep.subr.mxu0 0.0
    %99 = vmatpush1.msra.mxu0 %v38
    %100 = vmatprep.subr.mxu0 0.0
    %101 = vmatpush1.msra.mxu0 %v39
    %102 = vmatprep.subr.mxu0 0.0
    %103 = vmatpush1.msra.mxu0 %v40
    %104 = vmatprep.subr.mxu0 0.0
    %105 = vmatpush1.msra.mxu0 %v41
    %106 = vmatprep.subr.mxu0 0.0
    %107 = vmatpush1.msra.mxu0 %v42
    %108 = vmatprep.subr.mxu0 0.0
    %109 = vmatpush1.msra.mxu0 %v43
    %110 = vmatprep.subr.mxu0 0.0
    %111 = vmatpush1.msra.mxu0 %v44
    %112 = vmatprep.subr.mxu0 0.0
    %113 = vmatpush1.msra.mxu0 %v45
    %114 = vmatprep.subr.mxu0 0.0
    %115 = vmatpush1.msra.mxu0 %v46
    %116 = vmatprep.subr.mxu0 0.0
    %117 = vmatpush1.msra.mxu0 %v47
    %118 = vmatprep.subr.mxu0 0.0
    %119 = vmatpush1.msra.mxu0 %v48
    %120 = vmatprep.mubr.f32.mxu0 %v16
    %121 = vmatmul.mubr.f32.gmra.mrb[0].mxu0 %v15
    %v122 = vpop.f32.mrb[0].mxu0
    %v123 = vadd.f32 %v54, %v122
    %v124 = vpop.f32.mrb[0].mxu0
    %125 = vdwg.mxu0
    %126 = vmax.xlane.f32.xlu0 %v123
    %v127 = vpop.xlane.xlu0 %126
    %v128 = vsub.f32 %v123, %v127
    %v129 = vmul.f32 %v128, 1.442695
    %v130 = vpow.pop %v129
    %131 = vadd.xlane.f32.xlu0 %v130
    %v132 = vpop.xlane.xlu0 %131
    %v133 = vrcp.pop %v132
    %v134 = vmul.f32 %v132, %v133
    %v135 = vsub.f32 2.0, %v134
    %v136 = vmul.f32 %v133, %v135
    %v137 = vmul.f32 %v130, %v136
    %138 = vst [vmem:[#allocation2] sm:$0xff] %v137
    // Predicated region
    $region14: #{clf_forward.1} parent=1 // pred_check
      _
    $region15: #{clf_forward.1} parent=1 // pred_check_branch
      %140 = sbr.rel (0) target = $region17
    $region16: #{clf_forward.1} parent=1 // pred_region
      %s142 = ssub.s32 128, 128
      %143 = vsyncadd [#allocation3], %s142
      %s145 = sshll.u32 [#allocation2], 4
      %s146 = int_to_ptr.vmem [resolvable:$true] %s145
      %148 = dma.vmem_to_hbm [thread:$0]  %s146, 128, %s3, [#allocation3]
    $region17: #{clf_forward.1} parent=1 // pred_fallthru
      _
    // Predicated region
    $region18: #{clf_forward.1} parent=1 // pred_check
      _
    $region19: #{clf_forward.1} parent=1 // pred_check_branch
      %150 = sbr.rel (0) target = $region21
    $region20: #{clf_forward.1} parent=1 // pred_region
      %151 = dma.done [#allocation3], 128
    $region21: #{clf_forward.1} parent=1 // pred_fallthru
      _
    %152 = vsyncpa [#allocation3], 1

</llo_original>
